<compile_context>
chip_gen: v7x
topology: tpu7x:2x2x1
jax: 0.10.0
libtpu: 0.0.40
codegen_flags: <defaults>
</compile_context>

<pallas_src>
import functools

import jax
import jax.numpy as jnp
from jax.experimental import pallas as pl
from jax.experimental.pallas import tpu as pltpu

EPS = 1e-5  # torch.nn.BatchNorm1d default eps


def bert_head_kernel(hs_ref, w_ref, b_ref, out_ref, acc_ref, *,
                     seq_len, s_tile, mask_seq):
    """Grid = (batch_blocks, seq_blocks); the sequence axis is the reduction axis."""
    s = pl.program_id(1)

    @pl.when(s == 0)
    def _():
        acc_ref[...] = jnp.zeros_like(acc_ref)

    hs = hs_ref[...]                                            # (b_tile, s_tile, H)
    if mask_seq:
        # Last sequence tile may be partial; edge blocks are NOT guaranteed
        # zero-filled, so mask invalid positions before they enter the sum.
        pos = jax.lax.broadcasted_iota(jnp.int32, hs.shape, 1) + s * s_tile
        hs = jnp.where(pos < seq_len, hs, jnp.zeros_like(hs))

    b_tile = hs.shape[0]
    # Sequence-sum on the MXU (frees the VPU slot); fp32 accumulation in scratch.
    ones = jnp.ones((b_tile, 1, hs.shape[1]), hs.dtype)
    partial = jnp.einsum("bks,bsh->bkh", ones, hs,
                         preferred_element_type=jnp.float32)    # (b_tile, 1, H)
    acc_ref[...] += partial.reshape(acc_ref.shape)

    @pl.when(s == pl.num_programs(1) - 1)
    def _():
        # torch.mean(hidden_states, dim=1): divide by the true sequence length.
        mean_emb = acc_ref[...] * (1.0 / seq_len)               # (b_tile, H)
        # Dropout(eval) = identity; BN(eval) + Linear1 + Linear2 are pre-folded
        # into one (1, H) vector + scalar bias.  768 -> 1 is a VPU mul + lane reduce.
        out = jnp.sum(mean_emb * w_ref[...], axis=-1, keepdims=True)  # (b_tile, 1)
        out_ref[...] = (out + b_ref[0, 0]).astype(out_ref.dtype)


def bert_class_head(hidden_states, params, *, b_tile=None, s_tile=None,
                    vmem_limit_bytes=48 * 1024 * 1024):
    """hidden_states: (B, S, 768) -> (B, 1) float32 (eval-mode forward).

    hidden_states is streamed in its native dtype.  To halve HBM traffic, have the
    backbone emit bf16 directly -- a wrapper-side cast would materialize an extra
    full HBM pass and is deliberately NOT done here.
    """
    B, S, H = hidden_states.shape

    # ---- Offline fold: BN(eval) + Linear1 + Linear2 -> (1, H) vector + scalar ----
    scale = params["gamma"] * jax.lax.rsqrt(params["running_var"] + EPS)     # (1, H)
    shift = params["beta"] - params["running_mean"] * scale                  # (1, H)
    w12 = jnp.dot(params["w1"], params["w2"])                                # (H, 1)
    w_fold = (scale * w12.reshape(1, H)).astype(jnp.float32)                 # (1, H)
    b_fold = (jnp.dot(shift, w12) + jnp.dot(params["b1"], params["w2"])
              + params["b2"]).astype(jnp.float32)                            # (1, 1)

    # ---- Tiling: no batch padding, no sequence padding ----
    if b_tile is None:
        # Leading dim of the 3-D block is not (8,128)-constrained -> no rounding.
        # b_tile = 8 keeps >= 2 batch blocks (both TensorCores) once B is large.
        b_tile = B if B <= 8 else 8
    if s_tile is None:
        s_tile = S if S <= 512 else 512   # ~85% of HBM roofline; fits v7x VMEM
    mask_seq = (S % s_tile) != 0

    grid = (pl.cdiv(B, b_tile), pl.cdiv(S, s_tile))
    kernel = functools.partial(bert_head_kernel, seq_len=S, s_tile=s_tile,
                               mask_seq=mask_seq)

    return pl.pallas_call(
        kernel,
        out_shape=jax.ShapeDtypeStruct((B, 1), jnp.float32),
        grid_spec=pltpu.PrefetchScalarGridSpec(
            num_scalar_prefetch=0,
            grid=grid,
            in_specs=[
                # Streaming, auto-double-buffered hidden_states tiles.
                pl.BlockSpec((b_tile, s_tile, H), lambda b, s: (b, s, 0)),
                # Folded head vector: pinned VMEM block (constant index).
                pl.BlockSpec((1, H), lambda b, s: (0, 0)),
                # Folded scalar bias: SMEM (avoids a padded VMEM tile + DMA chain).
                pl.BlockSpec(memory_space=pltpu.MemorySpace.SMEM),
            ],
            # Output block is resident across the sequence (reduction) axis and
            # written back once per batch block (at s == last).
            out_specs=pl.BlockSpec((b_tile, 1), lambda b, s: (b, 0)),
            scratch_shapes=[pltpu.VMEM((b_tile, H), jnp.float32)],
        ),
        compiler_params=pltpu.CompilerParams(
            # Batch axis parallel (megacore sharding); reduction axis last/arbitrary.
            dimension_semantics=("parallel", "arbitrary"),
            vmem_limit_bytes=vmem_limit_bytes,
        ),
    )(hidden_states, w_fold, b_fold)


if __name__ == "__main__":
    key = jax.random.PRNGKey(0)
    B, S, H, D1 = 2, 128, 768, 256      # small batch/seq; H/D1 fixed by the module
    VOCAB, NTYPES = 32, 2

    k = jax.random.split(key, 11)

    # Inputs mirroring the PyTorch forward signature.
    input_ids = jax.random.randint(k[0], (B, S), 0, VOCAB)
    attn_mask = jnp.ones((B, S), jnp.float32)
    token_type_ids = jnp.zeros((B, S), jnp.int32)

    # --- Stubbed DNABERT-2 backbone (deterministic embedding lookup, plain JAX) ---
    tok_emb = 0.02 * jax.random.normal(k[1], (VOCAB, H), jnp.float32)
    typ_emb = 0.02 * jax.random.normal(k[2], (NTYPES, H), jnp.float32)
    hidden_states = (tok_emb[input_ids] + typ_emb[token_type_ids]) * attn_mask[..., None]
    # hidden_states: (B, S, H) float32

    # --- Deterministic head parameters (shapes from the module __init__) ---
    params = dict(
        gamma=1.0 + 0.1 * jax.random.normal(k[3], (1, H), jnp.float32),
        beta=0.05 * jax.random.normal(k[4], (1, H), jnp.float32),
        running_mean=0.02 * jax.random.normal(k[5], (1, H), jnp.float32),
        running_var=1.0 + 0.2 * jax.random.uniform(k[6], (1, H), jnp.float32),
        w1=jax.random.normal(k[7], (H, D1), jnp.float32) / jnp.sqrt(float(H)),
        b1=0.01 * jax.random.normal(k[8], (1, D1), jnp.float32),
        w2=jax.random.normal(k[9], (D1, 1), jnp.float32) / jnp.sqrt(float(D1)),
        b2=0.01 * jax.random.normal(k[10], (1, 1), jnp.float32),
    )

    # s_tile=64 exercises the multi-step streaming sequence reduction (grid = (1, 2)).
    out = jax.block_until_ready(bert_class_head(hidden_states, params, s_tile=64))
    assert out.shape == (B, 1) and out.dtype == jnp.float32

    # True fp32 reference (unfused eval-mode head, no dtype games).
    m = jnp.mean(hidden_states, axis=1)
    bn = ((m - params["running_mean"]) * jax.lax.rsqrt(params["running_var"] + EPS)
          * params["gamma"] + params["beta"])
    ref = jnp.dot(jnp.dot(bn, params["w1"]) + params["b1"], params["w2"]) + params["b2"]
    assert jnp.allclose(out, ref, rtol=1e-2, atol=2e-3), (out, ref)

    print("KERNEL_OK")
</pallas_src>

<mosaic_0001>
module attributes {stable_mosaic.version = 11 : i64} {
  func.func @bert_head_kernel(%arg0: i32, %arg1: i32, %arg2: memref<2x64x768xf32, #tpu.memory_space<vmem>>, %arg3: memref<1x768xf32, #tpu.memory_space<vmem>>, %arg4: memref<1x1xf32, #tpu.memory_space<smem>>, %arg5: memref<2x1xf32, #tpu.memory_space<vmem>>, %arg6: memref<2x768xf32, #tpu.memory_space<vmem>>) attributes {dimension_semantics = [#tpu.dimension_semantics<parallel>, #tpu.dimension_semantics<arbitrary>], iteration_bounds = array<i64: 1, 2>, scalar_prefetch = 0 : i64, scratch_operands = 1 : i64, tpu.core_type = #tpu.core_type<tc>, window_params = [{transform_indices = @transform_0, window_bounds = array<i64: 2, 64, 768>}, {pipeline_mode = #tpu.pipeline_mode<synchronous>, transform_indices = @transform_1, window_bounds = array<i64: 1, 768>}, {transform_indices = @transform_2, window_bounds = array<i64: 1, 1>}, {transform_indices = @transform_3, window_bounds = array<i64: 2, 1>}]} {
    %c0_i32 = arith.constant 0 : i32
    %0 = arith.cmpi eq, %arg1, %c0_i32 : i32
    %1 = arith.extui %0 : i1 to i32
    %c0_i32_0 = arith.constant 0 : i32
    %2 = arith.cmpi ne, %1, %c0_i32_0 : i32
    scf.if %2 {
      %cst_9 = arith.constant 0.000000e+00 : f32
      %13 = vector.broadcast %cst_9 : f32 to vector<2x768xf32>
      %c0_10 = arith.constant 0 : index
      %c0_11 = arith.constant 0 : index
      %14 = vector.load %arg6[%c0_10, %c0_11] : memref<2x768xf32, #tpu.memory_space<vmem>>, vector<2x768xf32>
      tpu.vector_store %arg6[%c0_10, %c0_11], %13 {strides = array<i32>} : memref<2x768xf32, #tpu.memory_space<vmem>>, vector<2x768xf32>,
    } else {
    }
    %c0 = arith.constant 0 : index
    %c0_1 = arith.constant 0 : index
    %c0_2 = arith.constant 0 : index
    %3 = vector.load %arg2[%c0, %c0_1, %c0_2] : memref<2x64x768xf32, #tpu.memory_space<vmem>>, vector<2x64x768xf32>
    %cst = arith.constant 1.000000e+00 : f32
    %4 = vector.broadcast %cst : f32 to vector<2x1x64xf32>
    "tpu.trace_start"() <{level = 10 : i32, message = "bks,bsh->bkh"}> : () -> ()
    %cst_3 = arith.constant dense<0.000000e+00> : vector<2x1x768xf32>
    %5 = tpu.matmul %4, %3, %cst_3 {dimension_numbers = #tpu.dot_dimension_numbers<[2], [1], [1], [2], [0, 0, 0, 1, 1, 2], [0], [0]>} : vector<2x1x64xf32>, vector<2x64x768xf32>, vector<2x1x768xf32> -> vector<2x1x768xf32>
    "tpu.trace_stop"() : () -> ()
    %c0_4 = arith.constant 0 : index
    %c0_5 = arith.constant 0 : index
    %6 = vector.load %arg6[%c0_4, %c0_5] : memref<2x768xf32, #tpu.memory_space<vmem>>, vector<2x768xf32>
    %7 = vector.shape_cast %5 : vector<2x1x768xf32> to vector<2x768xf32>
    %8 = arith.addf %6, %7 : vector<2x768xf32>
    %c0_6 = arith.constant 0 : index
    %c0_7 = arith.constant 0 : index
    %9 = vector.load %arg6[%c0_6, %c0_7] : memref<2x768xf32, #tpu.memory_space<vmem>>, vector<2x768xf32>
    tpu.vector_store %arg6[%c0_6, %c0_7], %8 {strides = array<i32>} : memref<2x768xf32, #tpu.memory_space<vmem>>, vector<2x768xf32>,
    %c1_i32 = arith.constant 1 : i32
    %10 = arith.cmpi eq, %arg1, %c1_i32 : i32
    %11 = arith.extui %10 : i1 to i32
    %c0_i32_8 = arith.constant 0 : i32
    %12 = arith.cmpi ne, %11, %c0_i32_8 : i32
    scf.if %12 {
      %c0_9 = arith.constant 0 : index
      %c0_10 = arith.constant 0 : index
      %13 = vector.load %arg6[%c0_9, %c0_10] : memref<2x768xf32, #tpu.memory_space<vmem>>, vector<2x768xf32>
      %cst_11 = arith.constant 7.812500e-03 : f32
      %14 = vector.broadcast %cst_11 : f32 to vector<2x768xf32>
      %15 = arith.mulf %13, %14 : vector<2x768xf32>
      %c0_12 = arith.constant 0 : index
      %c0_13 = arith.constant 0 : index
      %16 = vector.load %arg3[%c0_12, %c0_13] : memref<1x768xf32, #tpu.memory_space<vmem>>, vector<1x768xf32>
      %17 = vector.broadcast %16 : vector<1x768xf32> to vector<2x768xf32>
      %18 = arith.mulf %15, %17 : vector<2x768xf32>
      %cst_14 = arith.constant dense<0.000000e+00> : vector<2xf32>
      %19 = vector.multi_reduction <add>, %18, %cst_14 [1] : vector<2x768xf32> to vector<2xf32>
      %20 = vector.shape_cast %19 : vector<2xf32> to vector<2x1xf32>
      %c0_15 = arith.constant 0 : index
      %c0_16 = arith.constant 0 : index
      %21 = memref.load %arg4[%c0_15, %c0_16] : memref<1x1xf32, #tpu.memory_space<smem>>
      %22 = vector.broadcast %21 : f32 to vector<2x1xf32>
      %23 = arith.addf %20, %22 : vector<2x1xf32>
      %c0_17 = arith.constant 0 : index
      %c0_18 = arith.constant 0 : index
      %24 = vector.load %arg5[%c0_17, %c0_18] : memref<2x1xf32, #tpu.memory_space<vmem>>, vector<2x1xf32>
      tpu.vector_store %arg5[%c0_17, %c0_18], %23 {strides = array<i32>} : memref<2x1xf32, #tpu.memory_space<vmem>>, vector<2x1xf32>,
    } else {
    }
    return
  }
  func.func @transform_0(%arg0: i32, %arg1: i32) -> (i32, i32, i32) {
    %c0_i32 = arith.constant 0 : i32
    %c0_i32_0 = arith.constant 0 : i32
    return %arg0, %arg1, %c0_i32 : i32, i32, i32
  }
  func.func @transform_1(%arg0: i32, %arg1: i32) -> (i32, i32) {
    %c0_i32 = arith.constant 0 : i32
    %c0_i32_0 = arith.constant 0 : i32
    %c0_i32_1 = arith.constant 0 : i32
    return %c0_i32, %c0_i32_0 : i32, i32
  }
  func.func @transform_2(%arg0: i32, %arg1: i32) -> (i32, i32) {
    %c0_i32 = arith.constant 0 : i32
    %c0_i32_0 = arith.constant 0 : i32
    %c0_i32_1 = arith.constant 0 : i32
    return %c0_i32, %c0_i32_0 : i32, i32
  }
  func.func @transform_3(%arg0: i32, %arg1: i32) -> (i32, i32) {
    %c0_i32 = arith.constant 0 : i32
    %c0_i32_0 = arith.constant 0 : i32
    return %arg0, %c0_i32 : i32, i32
  }
}

</mosaic_0001>

<llo_original>
// kernel: tpu_custom_call.1
$region0: #{tpu_custom_call.1}
  #allocation0 [shape = 'u32[]', space=smem, size = 0x4, offset = 0x4, fixed_abs, tag = 'smem constant byte address 0x4 - core index']
  #allocation1 [shape = 'u32[144,128]{1,0:T(1,128)}', space=vmem, size = 0x12000, scoped, tag = 'internal scratch']
  #allocation2 [shape = 'f32[2,768]{1,0:T(2,128)}', space=vmem, size = 0x1800, scoped, tag = 'scratch operand']
  #allocation3 [shape = 'f32[1,1]{1,0:T(1,128)S(6)}', space=smem, size = 0x200, scoped, tag = 'scoped memory for tpu_custom_call.1']
  #allocation6 [shape = 's32[]', space=sflag, size = 0x4, offset = 0, fixed_abs, tag = 'sflag constant byte address 0x0 - dummy sync flag']
  %s0 = inlined_call_operand.hbm [shape: f32[2,128,768], index: 0, kind: input, shape index: {}]
  %s1 = inlined_call_operand.vmem [shape: f32[1,768], index: 1, kind: input, shape index: {}]
  %s2 = inlined_call_operand.<no memory space> [shape: f32[1,1], index: 2, kind: input, shape index: {}]
  %s3 = inlined_call_operand.vmem [shape: f32[2,1], index: 3, kind: output, shape index: {}]
  %s4 = sld [smem:[#allocation0]]
  $region57: #{tpu_custom_call.1} parent=0
    _
  %s6 = ssub.s32 1, %s4
  %s7 = scalar_select 0, %s6, %s4
  %8 = sst [smem:[#allocation3]] %s2
  $region1: #{tpu_custom_call.1} parent=0
    #allocation4 [shape = 'u8[786432]{0}', space=vmem, size = 0xc0000, scoped, tag = 'input window, operand 0']
    #allocation5 [shape = 's32[2]{0}', space=sflag, size = 0x8, scoped, tag = 'scoped memory for tpu_custom_call.1']
    %9 = vsyncpa [#allocation5], 0
    %s10 = scalar_lea.sflag [#allocation5], 1
    %11 = vsyncpa %s10, 0
    loop: start=0, step=1, limit=4
    $region2: #{tpu_custom_call.1} parent=1 // loop_pre_header
      _
    $region3: #{tpu_custom_call.1} parent=1 // loop_header
      %s13 = sphi 0, %s17
      %p14 = scmp.ge.s32.totalorder %s13, 4
      %s20 = sphi 0, %s32
      %s21 = sphi 0, %s28
      %s22 = sphi 0, %s20
      %s23 = sphi 0, %s21
      %s24 = sphi 0, %s22
      %s25 = sphi 0, %s23
      %s37 = sphi 0, %s39
      %s40 = sphi 0, %s37
      %s41 = sphi 0, %s40
      %s57 = sphi 0, %s41
      %s61 = sphi 0, %s61
      %s63 = sphi 0, %s61
      %s64 = sphi 0, %s63
      %s78 = sphi 0, %s64
      %s82 = sphi 0, %s82
      %s84 = sphi 0, %s82
      %s85 = sphi 0, %s84
      %s99 = sphi 0, %s85
      %s105 = sphi 0, %s107
      %s108 = sphi 0, %s105
      %s109 = sphi 0, %s108
      %s125 = sphi 0, %s109
    $region4: #{tpu_custom_call.1} parent=1 // loop_header_branch
      %16 = sbr.rel (%p14) target = $region8
    $region5: #{tpu_custom_call.1} parent=1 // loop_body
      %s18 = ssub.s32 %s13, 1
      %s19 = ssub.s32 %s13, 2
      %s26 = sadd.s32 1, %s21
      %p27 = scmp.ge.s32.totalorder %s26, 2
      %s28 = scalar_select %p27, 0, %s26
      %s29 = sadd.s32 1, %s20
      %s30 = scalar_select %p27, %s29, %s20
      %p31 = scmp.ge.s32.totalorder %s30, 1
      %s32 = scalar_select %p31, 0, %s30
      %s33 = ssub.s32 %s20, %s32
      %s34 = ssub.s32 %s21, %s28
      %s35 = sor.u32 %s33, %s34
      %p36 = scmp.eq.s32.totalorder %s35, 0
      %s38 = sadd.s32 %s37, 1
      %s39 = scalar_select %p36, %s37, %s38
      %p42 = pneg %p36
      %p43 = scmp.eq.s32.totalorder %s13, 1
      %p44 = por %p42, %p43
      %p45 = scmp.ne.s32.totalorder %s37, %s40
      %p46 = scmp.eq.s32.totalorder %s13, 0
      %p47 = por %p45, %p46
      %p48 = scmp.ne.s32.totalorder %s37, %s40
      %p49 = scmp.eq.s32.totalorder %s18, 1
      %p50 = por %p48, %p49
      %p51 = scmp.ne.s32.totalorder %s40, %s41
      %p52 = scmp.eq.s32.totalorder %s18, 0
      %p53 = por %p51, %p52
      %p54 = scmp.ne.s32.totalorder %s40, %s41
      %p55 = scmp.eq.s32.totalorder %s19, 1
      %p56 = por %p54, %p55
      %p58 = scmp.ne.s32.totalorder %s41, %s57
      %p59 = scmp.eq.s32.totalorder %s19, 0
      %p60 = por %p58, %p59
      %s62 = sadd.s32 %s61, 1
      %p65 = scmp.eq.s32.totalorder %s13, 1
      %p66 = scmp.ne.s32.totalorder %s61, %s63
      %p67 = scmp.eq.s32.totalorder %s13, 0
      %p68 = por %p66, %p67
      %p69 = scmp.ne.s32.totalorder %s61, %s63
      %p70 = scmp.eq.s32.totalorder %s18, 1
      %p71 = por %p69, %p70
      %p72 = scmp.ne.s32.totalorder %s63, %s64
      %p73 = scmp.eq.s32.totalorder %s18, 0
      %p74 = por %p72, %p73
      %p75 = scmp.ne.s32.totalorder %s63, %s64
      %p76 = scmp.eq.s32.totalorder %s19, 1
      %p77 = por %p75, %p76
      %p79 = scmp.ne.s32.totalorder %s64, %s78
      %p80 = scmp.eq.s32.totalorder %s19, 0
      %p81 = por %p79, %p80
      %s83 = sadd.s32 %s82, 1
      %p86 = scmp.eq.s32.totalorder %s13, 1
      %p87 = scmp.ne.s32.totalorder %s82, %s84
      %p88 = scmp.eq.s32.totalorder %s13, 0
      %p89 = por %p87, %p88
      %p90 = scmp.ne.s32.totalorder %s82, %s84
      %p91 = scmp.eq.s32.totalorder %s18, 1
      %p92 = por %p90, %p91
      %p93 = scmp.ne.s32.totalorder %s84, %s85
      %p94 = scmp.eq.s32.totalorder %s18, 0
      %p95 = por %p93, %p94
      %p96 = scmp.ne.s32.totalorder %s84, %s85
      %p97 = scmp.eq.s32.totalorder %s19, 1
      %p98 = por %p96, %p97
      %p100 = scmp.ne.s32.totalorder %s85, %s99
      %p101 = scmp.eq.s32.totalorder %s19, 0
      %p102 = por %p100, %p101
      %s103 = ssub.s32 %s20, %s32
      %p104 = scmp.eq.s32.totalorder %s103, 0
      %s106 = sadd.s32 %s105, 1
      %s107 = scalar_select %p104, %s105, %s106
      %p110 = pneg %p104
      %p111 = scmp.eq.s32.totalorder %s13, 1
      %p112 = por %p110, %p111
      %p113 = scmp.ne.s32.totalorder %s105, %s108
      %p114 = scmp.eq.s32.totalorder %s13, 0
      %p115 = por %p113, %p114
      %p116 = scmp.ne.s32.totalorder %s105, %s108
      %p117 = scmp.eq.s32.totalorder %s18, 1
      %p118 = por %p116, %p117
      %p119 = scmp.ne.s32.totalorder %s108, %s109
      %p120 = scmp.eq.s32.totalorder %s18, 0
      %p121 = por %p119, %p120
      %p122 = scmp.ne.s32.totalorder %s108, %s109
      %p123 = scmp.eq.s32.totalorder %s19, 1
      %p124 = por %p122, %p123
      %p126 = scmp.ne.s32.totalorder %s109, %s125
      %p127 = scmp.eq.s32.totalorder %s19, 0
      %p128 = por %p126, %p127
      %p129 = scmp.le.s32.totalorder 1, %s13
      %p130 = scmp.lt.s32.totalorder %s13, 3
      %p131 = pnand %p129, %p130
      %p132 = pneg %p131
      // Predicated region
      $region9: #{tpu_custom_call.1} parent=5 // pred_check
        _
      $region10: #{tpu_custom_call.1} parent=5 // pred_check_branch
        %134 = sbr.rel (%p131) target = $region12
      $region11: #{tpu_custom_call.1} parent=5 // pred_region
        %s135 = ssub.s32 %s13, 1
        // Predicated region
        $region13: #{tpu_custom_call.1} parent=11 // pred_check
          %p136 = pneg %p74
        $region14: #{tpu_custom_call.1} parent=11 // pred_check_branch
          %138 = sbr.rel (%p136) target = $region16
        $region15: #{tpu_custom_call.1} parent=11 // pred_region
          _
        $region16: #{tpu_custom_call.1} parent=11 // pred_fallthru
          _
        // Predicated region
        $region17: #{tpu_custom_call.1} parent=11 // pred_check
          %p139 = pneg %p95
        $region18: #{tpu_custom_call.1} parent=11 // pred_check_branch
          %141 = sbr.rel (%p139) target = $region20
        $region19: #{tpu_custom_call.1} parent=11 // pred_region
          _
        $region20: #{tpu_custom_call.1} parent=11 // pred_fallthru
          _
      $region12: #{tpu_custom_call.1} parent=5 // pred_fallthru
        _
      %p142 = scmp.lt.s32.totalorder %s13, 2
      // Predicated region
      $region21: #{tpu_custom_call.1} parent=5 // pred_check
        %p143 = pneg %p142
      $region22: #{tpu_custom_call.1} parent=5 // pred_check_branch
        %145 = sbr.rel (%p143) target = $region24
      $region23: #{tpu_custom_call.1} parent=5 // pred_region
        // Predicated region
        $region25: #{tpu_custom_call.1} parent=23 // pred_check
          %p146 = pneg %p47
        $region26: #{tpu_custom_call.1} parent=23 // pred_check_branch
          %148 = sbr.rel (%p146) target = $region28
        $region27: #{tpu_custom_call.1} parent=23 // pred_region
          #allocation7 [shape = 'u32[6]{0}', space=smem, size = 0x18, scoped, tag = 'DMA stride descriptor']
          %s149 = sand.u32 %s37, 1
          %s150 = scalar_lea.sflag [#allocation5], %s149
          %s151 = sand.u32 %s37, 1
          %s152 = smul.addr %s151, 768
          %s153 = scalar_lea.vmem [#allocation4], %s152
          %s154 = smul.u32 2, %s20
          %s155 = smul.u32 8, %s21
          %s157 = ssub.s32 12288, 12288
          %158 = vsyncadd %s150, %s157
          %s159 = smul.addr %s155, 6
          %s160 = smul.addr %s154, 96
          %s161 = sadd.s32 %s159, %s160
          %s162 = smul.addr %s161, 128
          %s163 = scalar_lea.hbm %s0, %s162
          %s165 = sshll.u32 1, 14
          %s166 = sxor.u32 4294967295, %s165
          %s168 = sld [smem:[#allocation0]]
          %s169 = sadd.s32 2, %s168
          %s171 = sshll.u32 7, 26
          %s172 = sxor.u32 4294967295, %s171
          %s173 = sand.u32 0, %s172
          %s174 = sshll.u32 %s169, 26
          %s175 = sor.u32 %s173, %s174
          %s176 = sshll.u32 %s153, 4
          %s177 = int_to_ptr.vmem [resolvable:$true] %s176
          %183 = sst [smem:[#allocation7]] 12288
          %s184 = scalar_lea.smem [#allocation7], 1
          %185 = sst [smem:[%s184]] 6144
          %s186 = scalar_lea.smem [#allocation7], 2
          %187 = sst [smem:[%s186]] 8
          %s188 = scalar_lea.smem [#allocation7], 3
          %189 = sst [smem:[%s188]] 768
          %s190 = scalar_lea.smem [#allocation7], 4
          %191 = sst [smem:[%s190]] 768
          %s192 = scalar_lea.smem [#allocation7], 5
          %193 = sst [smem:[%s192]] 48
          %195 = dma.general %s163, 12288, %s177, %s150, [#allocation6], [#allocation7], %s175, 0
        $region28: #{tpu_custom_call.1} parent=23 // pred_fallthru
          _
      $region24: #{tpu_custom_call.1} parent=5 // pred_fallthru
        _
      %p196 = scmp.le.s32.totalorder 1, %s13
      %p197 = scmp.lt.s32.totalorder %s13, 3
      %p198 = pnand %p196, %p197
      %p199 = pneg %p198
      // Predicated region
      $region29: #{tpu_custom_call.1} parent=5 // pred_check
        _
      $region30: #{tpu_custom_call.1} parent=5 // pred_check_branch
        %201 = sbr.rel (%p198) target = $region32
      $region31: #{tpu_custom_call.1} parent=5 // pred_region
        %s202 = ssub.s32 %s13, 1
        %s203 = sand.u32 %s40, 1
        %s204 = scalar_lea.sflag [#allocation5], %s203
        %s205 = sand.u32 %s40, 1
        %s206 = smul.addr %s205, 768
        %s207 = scalar_lea.vmem [#allocation4], %s206
        // Predicated region
        $region33: #{tpu_custom_call.1} parent=31 // pred_check
          %p208 = pneg %p53
        $region34: #{tpu_custom_call.1} parent=31 // pred_check_branch
          %210 = sbr.rel (%p208) target = $region36
        $region35: #{tpu_custom_call.1} parent=31 // pred_region
          %211 = dma.done %s204, 12288
        $region36: #{tpu_custom_call.1} parent=31 // pred_fallthru
          _
        %s212 = sand.u32 %s40, 1
        %s213 = scalar_lea.sflag [#allocation5], %s212
        %s214 = sand.u32 %s40, 1
        %s215 = smul.addr %s214, 768
        %s216 = scalar_lea.vmem [#allocation4], %s215
        %p217 = pneg %p53
        %p218 = pneg %p50
        %p219 = pneg %p74
        %p220 = pneg %p71
        %p221 = pneg %p95
        %p222 = pneg %p92
        %p223 = pneg %p121
        %p224 = pneg %p118
        %p225 = scmp.lt.s32.totalorder %s22, 0
        %s226 = scalar_select %p225, %s22, 0
        %s227 = smul.addr %s226, 2
        %s228 = scalar_lea.vmem %s3, %s227
        %s229 = smul.u32 2, %s22
        %s230 = smul.u32 8, %s23
        %p231 = scmp.lt.s32.totalorder %s22, 0
        %s232 = scalar_select %p231, %s22, 0
        %s233 = smul.addr %s232, 2
        %s234 = scalar_lea.vmem %s3, %s233
        %p235 = scmp.eq.s32.totalorder %s23, 0
        // Predicated region
        $region37: #{tpu_custom_call.1} parent=31 // pred_check
          %p236 = pneg %p235
        $region38: #{tpu_custom_call.1} parent=31 // pred_check_branch
          %238 = sbr.rel (%p236) target = $region40
        $region39: #{tpu_custom_call.1} parent=31 // pred_region
          %239 = vst [vmem:[#allocation2] sm:$0xff] 0.0
          %240 = vst [vmem:[#allocation2 + $0x8] sm:$0xf] 0.0
        $region40: #{tpu_custom_call.1} parent=31 // pred_fallthru
          _
        %v241 = vld [vmem:[%s207] sm:$0xff]
        %v242 = vld [vmem:[%s207 + $0x8] sm:$0xff]
        %v243 = vld [vmem:[%s207 + $0x10] sm:$0xff]
        %v244 = vld [vmem:[%s207 + $0x18] sm:$0xff]
        %v245 = vld [vmem:[%s207 + $0x20] sm:$0xff]
        %v246 = vld [vmem:[%s207 + $0x28] sm:$0xff]
        %v247 = vld [vmem:[%s207 + $0x30] sm:$0xff]
        %v248 = vld [vmem:[%s207 + $0x38] sm:$0xff]
        %v249 = vld [vmem:[%s207 + $0x40] sm:$0xff]
        %v250 = vld [vmem:[%s207 + $0x48] sm:$0xff]
        %v251 = vld [vmem:[%s207 + $0x50] sm:$0xff]
        %v252 = vld [vmem:[%s207 + $0x58] sm:$0xff]
        %v253 = vld [vmem:[%s207 + $0x60] sm:$0xff]
        %v254 = vld [vmem:[%s207 + $0x68] sm:$0xff]
        %v255 = vld [vmem:[%s207 + $0x70] sm:$0xff]
        %v256 = vld [vmem:[%s207 + $0x78] sm:$0xff]
        %v257 = vld [vmem:[%s207 + $0x80] sm:$0xff]
        %v258 = vld [vmem:[%s207 + $0x88] sm:$0xff]
        %v259 = vld [vmem:[%s207 + $0x90] sm:$0xff]
        %v260 = vld [vmem:[%s207 + $0x98] sm:$0xff]
        %v261 = vld [vmem:[%s207 + $0xa0] sm:$0xff]
        %v262 = vld [vmem:[%s207 + $0xa8] sm:$0xff]
        %v263 = vld [vmem:[%s207 + $0xb0] sm:$0xff]
        %v264 = vld [vmem:[%s207 + $0xb8] sm:$0xff]
        %v265 = vld [vmem:[%s207 + $0xc0] sm:$0xff]
        %v266 = vld [vmem:[%s207 + $0xc8] sm:$0xff]
        %v267 = vld [vmem:[%s207 + $0xd0] sm:$0xff]
        %v268 = vld [vmem:[%s207 + $0xd8] sm:$0xff]
        %v269 = vld [vmem:[%s207 + $0xe0] sm:$0xff]
        %v270 = vld [vmem:[%s207 + $0xe8] sm:$0xff]
        %v271 = vld [vmem:[%s207 + $0xf0] sm:$0xff]
        %v272 = vld [vmem:[%s207 + $0xf8] sm:$0xff]
        %v273 = vld [vmem:[%s207 + $0x100] sm:$0xff]
        %v274 = vld [vmem:[%s207 + $0x108] sm:$0xff]
        %v275 = vld [vmem:[%s207 + $0x110] sm:$0xff]
        %v276 = vld [vmem:[%s207 + $0x118] sm:$0xff]
        %v277 = vld [vmem:[%s207 + $0x120] sm:$0xff]
        %v278 = vld [vmem:[%s207 + $0x128] sm:$0xff]
        %v279 = vld [vmem:[%s207 + $0x130] sm:$0xff]
        %v280 = vld [vmem:[%s207 + $0x138] sm:$0xff]
        %v281 = vld [vmem:[%s207 + $0x140] sm:$0xff]
        %v282 = vld [vmem:[%s207 + $0x148] sm:$0xff]
        %v283 = vld [vmem:[%s207 + $0x150] sm:$0xff]
        %v284 = vld [vmem:[%s207 + $0x158] sm:$0xff]
        %v285 = vld [vmem:[%s207 + $0x160] sm:$0xff]
        %v286 = vld [vmem:[%s207 + $0x168] sm:$0xff]
        %v287 = vld [vmem:[%s207 + $0x170] sm:$0xff]
        %v288 = vld [vmem:[%s207 + $0x178] sm:$0xff]
        %v289 = vld [vmem:[%s207 + $0x180] sm:$0xff]
        %v290 = vld [vmem:[%s207 + $0x188] sm:$0xff]
        %v291 = vld [vmem:[%s207 + $0x190] sm:$0xff]
        %v292 = vld [vmem:[%s207 + $0x198] sm:$0xff]
        %v293 = vld [vmem:[%s207 + $0x1a0] sm:$0xff]
        %v294 = vld [vmem:[%s207 + $0x1a8] sm:$0xff]
        %v295 = vld [vmem:[%s207 + $0x1b0] sm:$0xff]
        %v296 = vld [vmem:[%s207 + $0x1b8] sm:$0xff]
        %v297 = vld [vmem:[%s207 + $0x1c0] sm:$0xff]
        %v298 = vld [vmem:[%s207 + $0x1c8] sm:$0xff]
        %v299 = vld [vmem:[%s207 + $0x1d0] sm:$0xff]
        %v300 = vld [vmem:[%s207 + $0x1d8] sm:$0xff]
        %v301 = vld [vmem:[%s207 + $0x1e0] sm:$0xff]
        %v302 = vld [vmem:[%s207 + $0x1e8] sm:$0xff]
        %v303 = vld [vmem:[%s207 + $0x1f0] sm:$0xff]
        %v304 = vld [vmem:[%s207 + $0x1f8] sm:$0xff]
        %v305 = vld [vmem:[%s207 + $0x200] sm:$0xff]
        %v306 = vld [vmem:[%s207 + $0x208] sm:$0xff]
        %v307 = vld [vmem:[%s207 + $0x210] sm:$0xff]
        %v308 = vld [vmem:[%s207 + $0x218] sm:$0xff]
        %v309 = vld [vmem:[%s207 + $0x220] sm:$0xff]
        %v310 = vld [vmem:[%s207 + $0x228] sm:$0xff]
        %v311 = vld [vmem:[%s207 + $0x230] sm:$0xff]
        %v312 = vld [vmem:[%s207 + $0x238] sm:$0xff]
        %v313 = vld [vmem:[%s207 + $0x240] sm:$0xff]
        %v314 = vld [vmem:[%s207 + $0x248] sm:$0xff]
        %v315 = vld [vmem:[%s207 + $0x250] sm:$0xff]
        %v316 = vld [vmem:[%s207 + $0x258] sm:$0xff]
        %v317 = vld [vmem:[%s207 + $0x260] sm:$0xff]
        %v318 = vld [vmem:[%s207 + $0x268] sm:$0xff]
        %v319 = vld [vmem:[%s207 + $0x270] sm:$0xff]
        %v320 = vld [vmem:[%s207 + $0x278] sm:$0xff]
        %v321 = vld [vmem:[%s207 + $0x280] sm:$0xff]
        %v322 = vld [vmem:[%s207 + $0x288] sm:$0xff]
        %v323 = vld [vmem:[%s207 + $0x290] sm:$0xff]
        %v324 = vld [vmem:[%s207 + $0x298] sm:$0xff]
        %v325 = vld [vmem:[%s207 + $0x2a0] sm:$0xff]
        %v326 = vld [vmem:[%s207 + $0x2a8] sm:$0xff]
        %v327 = vld [vmem:[%s207 + $0x2b0] sm:$0xff]
        %v328 = vld [vmem:[%s207 + $0x2b8] sm:$0xff]
        %v329 = vld [vmem:[%s207 + $0x2c0] sm:$0xff]
        %v330 = vld [vmem:[%s207 + $0x2c8] sm:$0xff]
        %v331 = vld [vmem:[%s207 + $0x2d0] sm:$0xff]
        %v332 = vld [vmem:[%s207 + $0x2d8] sm:$0xff]
        %v333 = vld [vmem:[%s207 + $0x2e0] sm:$0xff]
        %v334 = vld [vmem:[%s207 + $0x2e8] sm:$0xff]
        %v335 = vld [vmem:[%s207 + $0x2f0] sm:$0xff]
        %v336 = vld [vmem:[%s207 + $0x2f8] sm:$0xff]
        %vm337 = vcmask 523264
        %v339 = vsel %vm337, 1.0, 0
        %341 = vmatprep.subr.mxu0 %v242
        %342 = vmatpush1.msra.mxu0 %v241
        %343 = vmatprep.subr.mxu0 %v248
        %344 = vmatpush1.msra.mxu0 %v247
        %345 = vmatprep.subr.mxu0 %v254
        %346 = vmatpush1.msra.mxu0 %v253
        %347 = vmatprep.subr.mxu0 %v260
        %348 = vmatpush1.msra.mxu0 %v259
        %349 = vmatprep.subr.mxu0 %v266
        %350 = vmatpush1.msra.mxu0 %v265
        %351 = vmatprep.subr.mxu0 %v272
        %352 = vmatpush1.msra.mxu0 %v271
        %353 = vmatprep.subr.mxu0 %v278
        %354 = vmatpush1.msra.mxu0 %v277
        %355 = vmatprep.subr.mxu0 %v284
        %356 = vmatpush1.msra.mxu0 %v283
        %357 = vmatprep.subr.mxu0 0.0
        %358 = vmatpush1.msra.mxu0 0.0
        %359 = vmatprep.subr.mxu0 0.0
        %360 = vmatpush1.msra.mxu0 0.0
        %361 = vmatprep.subr.mxu0 0.0
        %362 = vmatpush1.msra.mxu0 0.0
        %363 = vmatprep.subr.mxu0 0.0
        %364 = vmatpush1.msra.mxu0 0.0
        %365 = vmatprep.subr.mxu0 0.0
        %366 = vmatpush1.msra.mxu0 0.0
        %367 = vmatprep.subr.mxu0 0.0
        %368 = vmatpush1.msra.mxu0 0.0
        %369 = vmatprep.subr.mxu0 0.0
        %370 = vmatpush1.msra.mxu0 0.0
        %371 = vmatprep.subr.mxu0 0.0
        %372 = vmatpush1.msra.mxu0 0.0
        %373 = vmatprep.subr.mxu0 0.0
        %374 = vmatpush1.msra.mxu0 0.0
        %375 = vmatprep.subr.mxu0 0.0
        %376 = vmatpush1.msra.mxu0 0.0
        %377 = vmatprep.subr.mxu0 0.0
        %378 = vmatpush1.msra.mxu0 0.0
        %379 = vmatprep.subr.mxu0 0.0
        %380 = vmatpush1.msra.mxu0 0.0
        %381 = vmatprep.subr.mxu0 0.0
        %382 = vmatpush1.msra.mxu0 0.0
        %383 = vmatprep.subr.mxu0 0.0
        %384 = vmatpush1.msra.mxu0 0.0
        %385 = vmatprep.subr.mxu0 0.0
        %386 = vmatpush1.msra.mxu0 0.0
        %387 = vmatprep.subr.mxu0 0.0
        %388 = vmatpush1.msra.mxu0 0.0
        %389 = vmatprep.subr.mxu0 0.0
        %390 = vmatpush1.msra.mxu0 0.0
        %391 = vmatprep.subr.mxu0 0.0
        %392 = vmatpush1.msra.mxu0 0.0
        %393 = vmatprep.subr.mxu0 0.0
        %394 = vmatpush1.msra.mxu0 0.0
        %395 = vmatprep.subr.mxu0 0.0
        %396 = vmatpush1.msra.mxu0 0.0
        %397 = vmatprep.subr.mxu0 0.0
        %398 = vmatpush1.msra.mxu0 0.0
        %399 = vmatprep.subr.mxu0 0.0
        %400 = vmatpush1.msra.mxu0 0.0
        %401 = vmatprep.subr.mxu0 0.0
        %402 = vmatpush1.msra.mxu0 0.0
        %403 = vmatprep.subr.mxu0 0.0
        %404 = vmatpush1.msra.mxu0 0.0
        %405 = vmatprep.mubr.f32.mxu0 0.0
        %406 = vmatmul.mubr.f32.gmra.mrb[0].mxu0 %v339
        %v407 = vpop.f32.mrb[0].mxu0
        %v408 = vadd.f32 0.0, %v407
        %v409 = vpop.f32.mrb[0].mxu0
        %v410 = vadd.f32 0.0, %v409
        %411 = vdwg.mxu0
        %412 = vmatprep.subr.mxu0 %v244
        %413 = vmatpush1.msra.mxu0 %v243
        %414 = vmatprep.subr.mxu0 %v250
        %415 = vmatpush1.msra.mxu0 %v249
        %416 = vmatprep.subr.mxu0 %v256
        %417 = vmatpush1.msra.mxu0 %v255
        %418 = vmatprep.subr.mxu0 %v262
        %419 = vmatpush1.msra.mxu0 %v261
        %420 = vmatprep.subr.mxu0 %v268
        %421 = vmatpush1.msra.mxu0 %v267
        %422 = vmatprep.subr.mxu0 %v274
        %423 = vmatpush1.msra.mxu0 %v273
        %424 = vmatprep.subr.mxu0 %v280
        %425 = vmatpush1.msra.mxu0 %v279
        %426 = vmatprep.subr.mxu0 %v286
        %427 = vmatpush1.msra.mxu0 %v285
        %428 = vmatprep.subr.mxu0 0.0
        %429 = vmatpush1.msra.mxu0 0.0
        %430 = vmatprep.subr.mxu0 0.0
        %431 = vmatpush1.msra.mxu0 0.0
        %432 = vmatprep.subr.mxu0 0.0
        %433 = vmatpush1.msra.mxu0 0.0
        %434 = vmatprep.subr.mxu0 0.0
        %435 = vmatpush1.msra.mxu0 0.0
        %436 = vmatprep.subr.mxu0 0.0
        %437 = vmatpush1.msra.mxu0 0.0
        %438 = vmatprep.subr.mxu0 0.0
        %439 = vmatpush1.msra.mxu0 0.0
        %440 = vmatprep.subr.mxu0 0.0
        %441 = vmatpush1.msra.mxu0 0.0
        %442 = vmatprep.subr.mxu0 0.0
        %443 = vmatpush1.msra.mxu0 0.0
        %444 = vmatprep.subr.mxu0 0.0
        %445 = vmatpush1.msra.mxu0 0.0
        %446 = vmatprep.subr.mxu0 0.0
        %447 = vmatpush1.msra.mxu0 0.0
        %448 = vmatprep.subr.mxu0 0.0
        %449 = vmatpush1.msra.mxu0 0.0
        %450 = vmatprep.subr.mxu0 0.0
        %451 = vmatpush1.msra.mxu0 0.0
        %452 = vmatprep.subr.mxu0 0.0
        %453 = vmatpush1.msra.mxu0 0.0
        %454 = vmatprep.subr.mxu0 0.0
        %455 = vmatpush1.msra.mxu0 0.0
        %456 = vmatprep.subr.mxu0 0.0
        %457 = vmatpush1.msra.mxu0 0.0
        %458 = vmatprep.subr.mxu0 0.0
        %459 = vmatpush1.msra.mxu0 0.0
        %460 = vmatprep.subr.mxu0 0.0
        %461 = vmatpush1.msra.mxu0 0.0
        %462 = vmatprep.subr.mxu0 0.0
        %463 = vmatpush1.msra.mxu0 0.0
        %464 = vmatprep.subr.mxu0 0.0
        %465 = vmatpush1.msra.mxu0 0.0
        %466 = vmatprep.subr.mxu0 0.0
        %467 = vmatpush1.msra.mxu0 0.0
        %468 = vmatprep.subr.mxu0 0.0
        %469 = vmatpush1.msra.mxu0 0.0
        %470 = vmatprep.subr.mxu0 0.0
        %471 = vmatpush1.msra.mxu0 0.0
        %472 = vmatprep.subr.mxu0 0.0
        %473 = vmatpush1.msra.mxu0 0.0
        %474 = vmatprep.subr.mxu0 0.0
        %475 = vmatpush1.msra.mxu0 0.0
        %476 = vmatprep.mubr.f32.mxu0 0.0
        %477 = vmatmul.mubr.f32.gmra.mrb[0].mxu0 %v339
        %v478 = vpop.f32.mrb[0].mxu0
        %v479 = vadd.f32 0.0, %v478
        %v480 = vpop.f32.mrb[0].mxu0
        %v481 = vadd.f32 0.0, %v480
        %482 = vdwg.mxu0
        %483 = vmatprep.subr.mxu0 %v246
        %484 = vmatpush1.msra.mxu0 %v245
        %485 = vmatprep.subr.mxu0 %v252
        %486 = vmatpush1.msra.mxu0 %v251
        %487 = vmatprep.subr.mxu0 %v258
        %488 = vmatpush1.msra.mxu0 %v257
        %489 = vmatprep.subr.mxu0 %v264
        %490 = vmatpush1.msra.mxu0 %v263
        %491 = vmatprep.subr.mxu0 %v270
        %492 = vmatpush1.msra.mxu0 %v269
        %493 = vmatprep.subr.mxu0 %v276
        %494 = vmatpush1.msra.mxu0 %v275
        %495 = vmatprep.subr.mxu0 %v282
        %496 = vmatpush1.msra.mxu0 %v281
        %497 = vmatprep.subr.mxu0 %v288
        %498 = vmatpush1.msra.mxu0 %v287
        %499 = vmatprep.subr.mxu0 0.0
        %500 = vmatpush1.msra.mxu0 0.0
        %501 = vmatprep.subr.mxu0 0.0
        %502 = vmatpush1.msra.mxu0 0.0
        %503 = vmatprep.subr.mxu0 0.0
        %504 = vmatpush1.msra.mxu0 0.0
        %505 = vmatprep.subr.mxu0 0.0
        %506 = vmatpush1.msra.mxu0 0.0
        %507 = vmatprep.subr.mxu0 0.0
        %508 = vmatpush1.msra.mxu0 0.0
        %509 = vmatprep.subr.mxu0 0.0
        %510 = vmatpush1.msra.mxu0 0.0
        %511 = vmatprep.subr.mxu0 0.0
        %512 = vmatpush1.msra.mxu0 0.0
        %513 = vmatprep.subr.mxu0 0.0
        %514 = vmatpush1.msra.mxu0 0.0
        %515 = vmatprep.subr.mxu0 0.0
        %516 = vmatpush1.msra.mxu0 0.0
        %517 = vmatprep.subr.mxu0 0.0
        %518 = vmatpush1.msra.mxu0 0.0
        %519 = vmatprep.subr.mxu0 0.0
        %520 = vmatpush1.msra.mxu0 0.0
        %521 = vmatprep.subr.mxu0 0.0
        %522 = vmatpush1.msra.mxu0 0.0
        %523 = vmatprep.subr.mxu0 0.0
        %524 = vmatpush1.msra.mxu0 0.0
        %525 = vmatprep.subr.mxu0 0.0
        %526 = vmatpush1.msra.mxu0 0.0
        %527 = vmatprep.subr.mxu0 0.0
        %528 = vmatpush1.msra.mxu0 0.0
        %529 = vmatprep.subr.mxu0 0.0
        %530 = vmatpush1.msra.mxu0 0.0
        %531 = vmatprep.subr.mxu0 0.0
        %532 = vmatpush1.msra.mxu0 0.0
        %533 = vmatprep.subr.mxu0 0.0
        %534 = vmatpush1.msra.mxu0 0.0
        %535 = vmatprep.subr.mxu0 0.0
        %536 = vmatpush1.msra.mxu0 0.0
        %537 = vmatprep.subr.mxu0 0.0
        %538 = vmatpush1.msra.mxu0 0.0
        %539 = vmatprep.subr.mxu0 0.0
        %540 = vmatpush1.msra.mxu0 0.0
        %541 = vmatprep.subr.mxu0 0.0
        %542 = vmatpush1.msra.mxu0 0.0
        %543 = vmatprep.subr.mxu0 0.0
        %544 = vmatpush1.msra.mxu0 0.0
        %545 = vmatprep.subr.mxu0 0.0
        %546 = vmatpush1.msra.mxu0 0.0
        %547 = vmatprep.mubr.f32.mxu0 0.0
        %548 = vmatmul.mubr.f32.gmra.mrb[0].mxu0 %v339
        %v549 = vpop.f32.mrb[0].mxu0
        %v550 = vadd.f32 0.0, %v549
        %v551 = vpop.f32.mrb[0].mxu0
        %v552 = vadd.f32 0.0, %v551
        %553 = vdwg.mxu0
        %554 = vmatprep.subr.mxu0 %v290
        %555 = vmatpush1.msra.mxu0 %v289
        %556 = vmatprep.subr.mxu0 %v296
        %557 = vmatpush1.msra.mxu0 %v295
        %558 = vmatprep.subr.mxu0 %v302
        %559 = vmatpush1.msra.mxu0 %v301
        %560 = vmatprep.subr.mxu0 %v308
        %561 = vmatpush1.msra.mxu0 %v307
        %562 = vmatprep.subr.mxu0 %v314
        %563 = vmatpush1.msra.mxu0 %v313
        %564 = vmatprep.subr.mxu0 %v320
        %565 = vmatpush1.msra.mxu0 %v319
        %566 = vmatprep.subr.mxu0 %v326
        %567 = vmatpush1.msra.mxu0 %v325
        %568 = vmatprep.subr.mxu0 %v332
        %569 = vmatpush1.msra.mxu0 %v331
        %570 = vmatprep.subr.mxu0 0.0
        %571 = vmatpush1.msra.mxu0 0.0
        %572 = vmatprep.subr.mxu0 0.0
        %573 = vmatpush1.msra.mxu0 0.0
        %574 = vmatprep.subr.mxu0 0.0
        %575 = vmatpush1.msra.mxu0 0.0
        %576 = vmatprep.subr.mxu0 0.0
        %577 = vmatpush1.msra.mxu0 0.0
        %578 = vmatprep.subr.mxu0 0.0
        %579 = vmatpush1.msra.mxu0 0.0
        %580 = vmatprep.subr.mxu0 0.0
        %581 = vmatpush1.msra.mxu0 0.0
        %582 = vmatprep.subr.mxu0 0.0
        %583 = vmatpush1.msra.mxu0 0.0
        %584 = vmatprep.subr.mxu0 0.0
        %585 = vmatpush1.msra.mxu0 0.0
        %586 = vmatprep.subr.mxu0 0.0
        %587 = vmatpush1.msra.mxu0 0.0
        %588 = vmatprep.subr.mxu0 0.0
        %589 = vmatpush1.msra.mxu0 0.0
        %590 = vmatprep.subr.mxu0 0.0
        %591 = vmatpush1.msra.mxu0 0.0
        %592 = vmatprep.subr.mxu0 0.0
        %593 = vmatpush1.msra.mxu0 0.0
        %594 = vmatprep.subr.mxu0 0.0
        %595 = vmatpush1.msra.mxu0 0.0
        %596 = vmatprep.subr.mxu0 0.0
        %597 = vmatpush1.msra.mxu0 0.0
        %598 = vmatprep.subr.mxu0 0.0
        %599 = vmatpush1.msra.mxu0 0.0
        %600 = vmatprep.subr.mxu0 0.0
        %601 = vmatpush1.msra.mxu0 0.0
        %602 = vmatprep.subr.mxu0 0.0
        %603 = vmatpush1.msra.mxu0 0.0
        %604 = vmatprep.subr.mxu0 0.0
        %605 = vmatpush1.msra.mxu0 0.0
        %606 = vmatprep.subr.mxu0 0.0
        %607 = vmatpush1.msra.mxu0 0.0
        %608 = vmatprep.subr.mxu0 0.0
        %609 = vmatpush1.msra.mxu0 0.0
        %610 = vmatprep.subr.mxu0 0.0
        %611 = vmatpush1.msra.mxu0 0.0
        %612 = vmatprep.subr.mxu0 0.0
        %613 = vmatpush1.msra.mxu0 0.0
        %614 = vmatprep.subr.mxu0 0.0
        %615 = vmatpush1.msra.mxu0 0.0
        %616 = vmatprep.subr.mxu0 0.0
        %617 = vmatpush1.msra.mxu0 0.0
        %618 = vmatprep.mubr.f32.mxu0 0.0
        %619 = vmatmul.mubr.f32.gmra.mrb[0].mxu0 %v339
        %v620 = vpop.f32.mrb[0].mxu0
        %v621 = vadd.f32 0.0, %v620
        %v622 = vpop.f32.mrb[0].mxu0
        %v623 = vadd.f32 0.0, %v622
        %624 = vdwg.mxu0
        %625 = vmatprep.subr.mxu0 %v292
        %626 = vmatpush1.msra.mxu0 %v291
        %627 = vmatprep.subr.mxu0 %v298
        %628 = vmatpush1.msra.mxu0 %v297
        %629 = vmatprep.subr.mxu0 %v304
        %630 = vmatpush1.msra.mxu0 %v303
        %631 = vmatprep.subr.mxu0 %v310
        %632 = vmatpush1.msra.mxu0 %v309
        %633 = vmatprep.subr.mxu0 %v316
        %634 = vmatpush1.msra.mxu0 %v315
        %635 = vmatprep.subr.mxu0 %v322
        %636 = vmatpush1.msra.mxu0 %v321
        %637 = vmatprep.subr.mxu0 %v328
        %638 = vmatpush1.msra.mxu0 %v327
        %639 = vmatprep.subr.mxu0 %v334
        %640 = vmatpush1.msra.mxu0 %v333
        %641 = vmatprep.subr.mxu0 0.0
        %642 = vmatpush1.msra.mxu0 0.0
        %643 = vmatprep.subr.mxu0 0.0
        %644 = vmatpush1.msra.mxu0 0.0
        %645 = vmatprep.subr.mxu0 0.0
        %646 = vmatpush1.msra.mxu0 0.0
        %647 = vmatprep.subr.mxu0 0.0
        %648 = vmatpush1.msra.mxu0 0.0
        %649 = vmatprep.subr.mxu0 0.0
        %650 = vmatpush1.msra.mxu0 0.0
        %651 = vmatprep.subr.mxu0 0.0
        %652 = vmatpush1.msra.mxu0 0.0
        %653 = vmatprep.subr.mxu0 0.0
        %654 = vmatpush1.msra.mxu0 0.0
        %655 = vmatprep.subr.mxu0 0.0
        %656 = vmatpush1.msra.mxu0 0.0
        %657 = vmatprep.subr.mxu0 0.0
        %658 = vmatpush1.msra.mxu0 0.0
        %659 = vmatprep.subr.mxu0 0.0
        %660 = vmatpush1.msra.mxu0 0.0
        %661 = vmatprep.subr.mxu0 0.0
        %662 = vmatpush1.msra.mxu0 0.0
        %663 = vmatprep.subr.mxu0 0.0
        %664 = vmatpush1.msra.mxu0 0.0
        %665 = vmatprep.subr.mxu0 0.0
        %666 = vmatpush1.msra.mxu0 0.0
        %667 = vmatprep.subr.mxu0 0.0
        %668 = vmatpush1.msra.mxu0 0.0
        %669 = vmatprep.subr.mxu0 0.0
        %670 = vmatpush1.msra.mxu0 0.0
        %671 = vmatprep.subr.mxu0 0.0
        %672 = vmatpush1.msra.mxu0 0.0
        %673 = vmatprep.subr.mxu0 0.0
        %674 = vmatpush1.msra.mxu0 0.0
        %675 = vmatprep.subr.mxu0 0.0
        %676 = vmatpush1.msra.mxu0 0.0
        %677 = vmatprep.subr.mxu0 0.0
        %678 = vmatpush1.msra.mxu0 0.0
        %679 = vmatprep.subr.mxu0 0.0
        %680 = vmatpush1.msra.mxu0 0.0
        %681 = vmatprep.subr.mxu0 0.0
        %682 = vmatpush1.msra.mxu0 0.0
        %683 = vmatprep.subr.mxu0 0.0
        %684 = vmatpush1.msra.mxu0 0.0
        %685 = vmatprep.subr.mxu0 0.0
        %686 = vmatpush1.msra.mxu0 0.0
        %687 = vmatprep.subr.mxu0 0.0
        %688 = vmatpush1.msra.mxu0 0.0
        %689 = vmatprep.mubr.f32.mxu0 0.0
        %690 = vmatmul.mubr.f32.gmra.mrb[0].mxu0 %v339
        %v691 = vpop.f32.mrb[0].mxu0
        %v692 = vadd.f32 0.0, %v691
        %v693 = vpop.f32.mrb[0].mxu0
        %v694 = vadd.f32 0.0, %v693
        %695 = vdwg.mxu0
        %696 = vmatprep.subr.mxu0 %v294
        %697 = vmatpush1.msra.mxu0 %v293
        %698 = vmatprep.subr.mxu0 %v300
        %699 = vmatpush1.msra.mxu0 %v299
        %700 = vmatprep.subr.mxu0 %v306
        %701 = vmatpush1.msra.mxu0 %v305
        %702 = vmatprep.subr.mxu0 %v312
        %703 = vmatpush1.msra.mxu0 %v311
        %704 = vmatprep.subr.mxu0 %v318
        %705 = vmatpush1.msra.mxu0 %v317
        %706 = vmatprep.subr.mxu0 %v324
        %707 = vmatpush1.msra.mxu0 %v323
        %708 = vmatprep.subr.mxu0 %v330
        %709 = vmatpush1.msra.mxu0 %v329
        %710 = vmatprep.subr.mxu0 %v336
        %711 = vmatpush1.msra.mxu0 %v335
        %712 = vmatprep.subr.mxu0 0.0
        %713 = vmatpush1.msra.mxu0 0.0
        %714 = vmatprep.subr.mxu0 0.0
        %715 = vmatpush1.msra.mxu0 0.0
        %716 = vmatprep.subr.mxu0 0.0
        %717 = vmatpush1.msra.mxu0 0.0
        %718 = vmatprep.subr.mxu0 0.0
        %719 = vmatpush1.msra.mxu0 0.0
        %720 = vmatprep.subr.mxu0 0.0
        %721 = vmatpush1.msra.mxu0 0.0
        %722 = vmatprep.subr.mxu0 0.0
        %723 = vmatpush1.msra.mxu0 0.0
        %724 = vmatprep.subr.mxu0 0.0
        %725 = vmatpush1.msra.mxu0 0.0
        %726 = vmatprep.subr.mxu0 0.0
        %727 = vmatpush1.msra.mxu0 0.0
        %728 = vmatprep.subr.mxu0 0.0
        %729 = vmatpush1.msra.mxu0 0.0
        %730 = vmatprep.subr.mxu0 0.0
        %731 = vmatpush1.msra.mxu0 0.0
        %732 = vmatprep.subr.mxu0 0.0
        %733 = vmatpush1.msra.mxu0 0.0
        %734 = vmatprep.subr.mxu0 0.0
        %735 = vmatpush1.msra.mxu0 0.0
        %736 = vmatprep.subr.mxu0 0.0
        %737 = vmatpush1.msra.mxu0 0.0
        %738 = vmatprep.subr.mxu0 0.0
        %739 = vmatpush1.msra.mxu0 0.0
        %740 = vmatprep.subr.mxu0 0.0
        %741 = vmatpush1.msra.mxu0 0.0
        %742 = vmatprep.subr.mxu0 0.0
        %743 = vmatpush1.msra.mxu0 0.0
        %744 = vmatprep.subr.mxu0 0.0
        %745 = vmatpush1.msra.mxu0 0.0
        %746 = vmatprep.subr.mxu0 0.0
        %747 = vmatpush1.msra.mxu0 0.0
        %748 = vmatprep.subr.mxu0 0.0
        %749 = vmatpush1.msra.mxu0 0.0
        %750 = vmatprep.subr.mxu0 0.0
        %751 = vmatpush1.msra.mxu0 0.0
        %752 = vmatprep.subr.mxu0 0.0
        %753 = vmatpush1.msra.mxu0 0.0
        %754 = vmatprep.subr.mxu0 0.0
        %755 = vmatpush1.msra.mxu0 0.0
        %756 = vmatprep.subr.mxu0 0.0
        %757 = vmatpush1.msra.mxu0 0.0
        %758 = vmatprep.subr.mxu0 0.0
        %759 = vmatpush1.msra.mxu0 0.0
        %760 = vmatprep.mubr.f32.mxu0 0.0
        %761 = vmatmul.mubr.f32.gmra.mrb[0].mxu0 %v339
        %v762 = vpop.f32.mrb[0].mxu0
        %v763 = vadd.f32 0.0, %v762
        %v764 = vpop.f32.mrb[0].mxu0
        %v765 = vadd.f32 0.0, %v764
        %766 = vdwg.mxu0
        %v767 = vld [vmem:[#allocation2] sm:$0xff]
        %v768 = vld [vmem:[#allocation2 + $0x8] sm:$0xf]
        %v781 = vcombine.low %v408, %v410
        %v782 = vcombine.low %v479, %v481
        %v784 = vunpack.c.l.s4 1983009808
        %v785 = vunpack.c.0.s8 %v784
        %v786 = vlaneseq
        %v787 = vshrl.u32 %v786, 7
        %v788 = vsub.s32 %v785, %v787
        %v789 = vrot.slane %v781, %v788
        %v791 = vunpack.c.l.s4 1983009808
        %v792 = vunpack.c.0.s8 %v791
        %v793 = vlaneseq
        %v794 = vshrl.u32 %v793, 7
        %v795 = vsub.s32 %v792, %v794
        %v796 = vrot.slane %v782, %v795
        %v797 = vcombine.low %v789, %v796
        %v798 = vcombine.low %v550, %v552
        %v800 = vunpack.c.l.s4 1983009808
        %v801 = vunpack.c.0.s8 %v800
        %v802 = vlaneseq
        %v803 = vshrl.u32 %v802, 7
        %v804 = vsub.s32 %v801, %v803
        %v805 = vrot.slane %v798, %v804
        %v806 = vcombine.low %v621, %v623
        %v807 = vcombine.low %v692, %v694
        %v809 = vunpack.c.l.s4 1983009808
        %v810 = vunpack.c.0.s8 %v809
        %v811 = vlaneseq
        %v812 = vshrl.u32 %v811, 7
        %v813 = vsub.s32 %v810, %v812
        %v814 = vrot.slane %v806, %v813
        %v816 = vunpack.c.l.s4 1983009808
        %v817 = vunpack.c.0.s8 %v816
        %v818 = vlaneseq
        %v819 = vshrl.u32 %v818, 7
        %v820 = vsub.s32 %v817, %v819
        %v821 = vrot.slane %v807, %v820
        %v822 = vcombine.low %v814, %v821
        %v823 = vcombine.low %v763, %v765
        %v825 = vunpack.c.l.s4 1983009808
        %v826 = vunpack.c.0.s8 %v825
        %v827 = vlaneseq
        %v828 = vshrl.u32 %v827, 7
        %v829 = vsub.s32 %v826, %v828
        %v830 = vrot.slane %v823, %v829
        %vm831 = vcmask 1044484
        %v832 = vsel %vm831, %v797, %v797
        %vm833 = vcmask 1046534
        %v834 = vsel %vm833, %v797, %v832
        %v835 = vrot.slane %v822, 7
        %vm836 = vcmask 1041409
        %v837 = vsel %vm836, %v835, %v834
        %vm838 = vcmask 1043459
        %v839 = vsel %vm838, %v835, %v837
        %vm840 = vcmask 1045509
        %v841 = vsel %vm840, %v835, %v839
        %vm842 = vcmask 1047559
        %v843 = vsel %vm842, %v835, %v841
        %v844 = vsel %vm831, %v805, %v805
        %v845 = vsel %vm833, %v805, %v844
        %v846 = vrot.slane %v830, 7
        %v847 = vsel %vm836, %v846, %v845
        %v848 = vsel %vm838, %v846, %v847
        %v849 = vsel %vm840, %v846, %v848
        %v850 = vsel %vm842, %v846, %v849
        %v853 = vadd.f32 %v767, %v843
        %v854 = vadd.f32 %v768, %v850
        %855 = vst [vmem:[#allocation2] sm:$0xff] %v853
        %856 = vst [vmem:[#allocation2 + $0x8] sm:$0xf] %v854
        %p857 = scmp.eq.s32.totalorder %s23, 1
        // Predicated region
        $region41: #{tpu_custom_call.1} parent=31 // pred_check
          %p858 = pneg %p857
        $region42: #{tpu_custom_call.1} parent=31 // pred_check_branch
          %860 = sbr.rel (%p858) target = $region44
        $region43: #{tpu_custom_call.1} parent=31 // pred_region
          %v861 = vld [vmem:[#allocation2] sm:$0xff]
          %v862 = vld [vmem:[#allocation2 + $0x8] sm:$0xf]
          %v863 = vmul.f32 %v861, 0.0078125
          %v864 = vmul.f32 %v862, 0.0078125
          %v865 = vld [vmem:[%s1] sm:$0x3f]
          %v867 = vlaneseq
          %v868 = vshrl.u32 %v867, 7
          %v869 = vsub.s32 0, %v868
          %v870 = vrot.slane %v865, %v869
          %v871 = vlaneseq
          %v872 = vshrl.u32 %v871, 7
          %v873 = vsub.s32 1, %v872
          %v874 = vrot.slane %v865, %v873
          %v875 = vlaneseq
          %v876 = vshrl.u32 %v875, 7
          %v877 = vsub.s32 2, %v876
          %v878 = vrot.slane %v865, %v877
          %v879 = vlaneseq
          %v880 = vshrl.u32 %v879, 7
          %v881 = vsub.s32 3, %v880
          %v882 = vrot.slane %v865, %v881
          %v883 = vlaneseq
          %v884 = vshrl.u32 %v883, 7
          %v885 = vsub.s32 4, %v884
          %v886 = vrot.slane %v865, %v885
          %v887 = vlaneseq
          %v888 = vshrl.u32 %v887, 7
          %v889 = vsub.s32 5, %v888
          %v890 = vrot.slane %v865, %v889
          %v891 = vcombine.low %v870, %v874
          %v892 = vcombine.low %v878, %v882
          %v894 = vunpack.c.l.s4 1983009808
          %v895 = vunpack.c.0.s8 %v894
          %v896 = vlaneseq
          %v897 = vshrl.u32 %v896, 7
          %v898 = vsub.s32 %v895, %v897
          %v899 = vrot.slane %v891, %v898
          %v901 = vunpack.c.l.s4 1983009808
          %v902 = vunpack.c.0.s8 %v901
          %v903 = vlaneseq
          %v904 = vshrl.u32 %v903, 7
          %v905 = vsub.s32 %v902, %v904
          %v906 = vrot.slane %v892, %v905
          %v907 = vcombine.low %v899, %v906
          %v908 = vcombine.low %v886, %v890
          %v910 = vunpack.c.l.s4 1983009808
          %v911 = vunpack.c.0.s8 %v910
          %v912 = vlaneseq
          %v913 = vshrl.u32 %v912, 7
          %v914 = vsub.s32 %v911, %v913
          %v915 = vrot.slane %v908, %v914
          %v918 = vmul.f32 %v863, %v907
          %v919 = vmul.f32 %v864, %v915
          %v922 = vcombine.high %v918, %v918
          %v924 = vunpack.c.l.s4 1983009808
          %v925 = vunpack.c.0.s8 %v924
          %v926 = vlaneseq
          %v927 = vshrl.u32 %v926, 7
          %v928 = vsub.s32 %v925, %v927
          %v929 = vrot.slane %v918, %v928
          %v931 = vunpack.c.l.s4 1983009808
          %v932 = vunpack.c.0.s8 %v931
          %v933 = vlaneseq
          %v934 = vshrl.u32 %v933, 7
          %v935 = vsub.s32 %v932, %v934
          %v936 = vrot.slane %v922, %v935
          %v937 = vcombine.high %v929, %v929
          %v938 = vcombine.high %v936, %v936
          %v940 = vunpack.c.l.s4 1983009808
          %v941 = vunpack.c.0.s8 %v940
          %v942 = vlaneseq
          %v943 = vshrl.u32 %v942, 7
          %v944 = vsub.s32 %v941, %v943
          %v945 = vrot.slane %v919, %v944
          %v946 = vcombine.high %v945, %v945
          %vm953 = vcmask 1041408
          %v954 = vsel %vm953, %v929, 0.0
          %v955 = vsel %vm953, %v937, 0.0
          %v956 = vadd.f32 %v954, %v955
          %v957 = vsel %vm953, %v936, 0.0
          %v958 = vadd.f32 %v956, %v957
          %v959 = vsel %vm953, %v938, 0.0
          %v960 = vadd.f32 %v958, %v959
          %v961 = vsel %vm953, %v945, 0.0
          %v962 = vadd.f32 %v960, %v961
          %v963 = vsel %vm953, %v946, 0.0
          %v964 = vadd.f32 %v962, %v963
          %965 = vadd.xlane.f32.xlu0 %v964
          %v966 = vpop.xlane.xlu0 %965
          %s967 = sld [smem:[#allocation3]]
          %v968 = vstv %s967
          %v969 = vadd.f32 %v966, %v968
          %vm970 = vcmask 1024
          %971 = vst.msk [vmem:[%s234] sm:$0x3] %vm970, %v969
        $region44: #{tpu_custom_call.1} parent=31 // pred_fallthru
          _
        %p972 = scmp.lt.s32.totalorder %s22, 0
        %s973 = scalar_select %p972, %s22, 0
        %s974 = smul.addr %s973, 2
        %s975 = scalar_lea.vmem %s3, %s974
        // Predicated region
        $region45: #{tpu_custom_call.1} parent=31 // pred_check
          %p976 = pneg %p118
        $region46: #{tpu_custom_call.1} parent=31 // pred_check_branch
          %978 = sbr.rel (%p976) target = $region48
        $region47: #{tpu_custom_call.1} parent=31 // pred_region
          _
        $region48: #{tpu_custom_call.1} parent=31 // pred_fallthru
          _
        // Predicated region
        $region49: #{tpu_custom_call.1} parent=31 // pred_check
          %p979 = pneg %p118
        $region50: #{tpu_custom_call.1} parent=31 // pred_check_branch
          %981 = sbr.rel (%p979) target = $region52
        $region51: #{tpu_custom_call.1} parent=31 // pred_region
          %p982 = scmp.lt.s32.totalorder %s22, 0
          %s983 = scalar_select %p982, %s22, 0
          %s984 = smul.addr %s983, 2
          %s985 = scalar_lea.vmem %s3, %s984
        $region52: #{tpu_custom_call.1} parent=31 // pred_fallthru
          _
      $region32: #{tpu_custom_call.1} parent=5 // pred_fallthru
        _
      %p986 = scmp.le.s32.totalorder 2, %s13
      // Predicated region
      $region53: #{tpu_custom_call.1} parent=5 // pred_check
        %p987 = pneg %p986
      $region54: #{tpu_custom_call.1} parent=5 // pred_check_branch
        %989 = sbr.rel (%p987) target = $region56
      $region55: #{tpu_custom_call.1} parent=5 // pred_region
        %s990 = ssub.s32 %s13, 2
      $region56: #{tpu_custom_call.1} parent=5 // pred_fallthru
        _
    $region6: #{tpu_custom_call.1} parent=1 // loop_footer
      %s17 = sadd.s32 1, %s13
    $region7: #{tpu_custom_call.1} parent=1 // loop_footer_branch
      %12 = sbr.rel target = $region3
    $region8: #{tpu_custom_call.1} parent=1 // loop_exit
      _
    %991 = vsyncpa [#allocation5], 1
    %s992 = scalar_lea.sflag [#allocation5], 1
    %993 = vsyncpa %s992, 1

</llo_original>
